<compile_context>
chip_gen: v5e
topology: v5e:2x2
jax: 0.10.0
libtpu: 0.0.40
codegen_flags: <defaults>
</compile_context>

<pallas_src>
import jax
import jax.numpy as jnp
from jax.experimental import pallas as pl
from jax.experimental.pallas import tpu as pltpu


def _round_up(x, m):
    return ((x + m - 1) // m) * m


# ---------------------------------------------------------------------------
# Kernel: one row-tile of a matmul against a weight that stays resident in
# VMEM across grid steps.  w_ref:(K,N), x_ref:(tile_m,K), o_ref:(tile_m,N).
# ---------------------------------------------------------------------------
def _row_tile_matmul_kernel(w_ref, x_ref, o_ref):
    o_ref[...] = jnp.dot(
        x_ref[...], w_ref[...], preferred_element_type=jnp.float32
    ).astype(o_ref.dtype)


_VMEM_BUDGET_BYTES = 12 * 1024 * 1024  # fits v5e's 16 MiB default scoped VMEM


def _pick_row_tile(m, k, n, itemsize):
    """Largest row tile fitting the double-buffered (lane-padded) VMEM budget,
    a multiple of 8; keep >=2 tiles when m is large (v7x has 2 TensorCores)."""
    per_row = (_round_up(k, 128) + _round_up(n, 128)) * itemsize * 2
    max_tile = max(8, (_VMEM_BUDGET_BYTES // per_row) // 8 * 8)
    if m <= max_tile:
        if m >= 1024:  # big enough to be worth sharding across 2 TCs
            return min(max_tile, _round_up(-(-m // 2), 8))
        return m       # tiny: single full-extent tile (always a legal block)
    return max_tile


def _row_tiled_matmul(x, w):
    """out = x @ w with x:(M,K), w:(K,N); rows tiled, weight resident."""
    m, k = x.shape
    k2, n = w.shape
    assert k == k2
    tile_m = _pick_row_tile(m, k, n, x.dtype.itemsize)
    grid_m = pl.cdiv(m, tile_m)  # partial boundary block is masked by Pallas
    return pl.pallas_call(
        _row_tile_matmul_kernel,
        out_shape=jax.ShapeDtypeStruct((m, n), x.dtype),
        grid_spec=pl.GridSpec(
            grid=(grid_m,),
            in_specs=[
                pl.BlockSpec((k, n), lambda i: (0, 0)),       # weight, resident
                pl.BlockSpec((tile_m, k), lambda i: (i, 0)),  # row tile of x
            ],
            out_specs=pl.BlockSpec((tile_m, n), lambda i: (i, 0)),
        ),
        compiler_params=pltpu.CompilerParams(
            dimension_semantics=("parallel",),  # independent row tiles
        ),
        cost_estimate=pl.CostEstimate(
            flops=2 * m * k * n,
            transcendentals=0,
            bytes_accessed=(m * k + k * n + m * n) * x.dtype.itemsize,
        ),
    )(w, x)


def probabilistic_model_forward(features, fc_weight):
    """
    features : (..., T) float32
    fc_weight: (H, T)   -- nn.Linear(T, H, bias=False).weight (PyTorch layout)
    returns  : (..., H)
    """
    T = features.shape[-1]
    H = fc_weight.shape[0]
    lead = features.shape[:-1]
    rows = 1
    for d in lead:
        rows *= d

    x2d = features.reshape(rows, T)  # free: contiguous collapse of leading dims

    if 0 < T <= 128 and 128 % T == 0:
        # ---- packed, fully lane-dense path (no transposes, no copies) ------
        pack = 128 // T
        rows_p = _round_up(rows, pack)
        if rows_p != rows:  # rare: one pad copy only when rows % pack != 0
            x2d = jnp.pad(x2d, ((0, rows_p - rows), (0, 0)))
        xp = x2d.reshape(rows_p // pack, pack * T)  # free reshape, 128 lanes
        # Block-diagonal weight (128, pack*H): `pack` copies of W^T so the MXU
        # de-interleaves the packed rows while it multiplies; zeros are free
        # (kernel stays HBM-bandwidth bound).
        w_big = jnp.kron(jnp.eye(pack, dtype=fc_weight.dtype), fc_weight.T)
        out_p = _row_tiled_matmul(xp, w_big)        # (rows_p//pack, pack*H)
        out = out_p.reshape(rows_p, H)              # free reshape back
        if rows_p != rows:
            out = out[:rows]
    else:
        # ---- fallback: natural layout (lane-padded in VMEM, still correct) -
        out = _row_tiled_matmul(x2d, fc_weight.T)   # (rows, H)

    return out.reshape(*lead, H)


if __name__ == "__main__":
    # Module hyperparameters consistent with the forward pass
    num_timesteps_input = 8
    hidden_units = 32

    key = jax.random.PRNGKey(0)
    k_x, k_w, k_x2, k_x3 = jax.random.split(key, 4)

    # nn.Linear(T, H, bias=False).weight ~ U(-1/sqrt(T), 1/sqrt(T))
    bound = 1.0 / (num_timesteps_input ** 0.5)
    fc_weight = jax.random.uniform(
        k_w, (hidden_units, num_timesteps_input),
        minval=-bound, maxval=bound, dtype=jnp.float32,
    )

    def check(feats, w):
        z = jax.block_until_ready(probabilistic_model_forward(feats, w))
        z_ref = jnp.einsum("...t,ht->...h", feats, w)
        assert z.shape == z_ref.shape
        assert jnp.allclose(z, z_ref, atol=1e-5, rtol=1e-5)

    # 1) module-sized input: (num_nodes, feat_dim, T), rows multiple of pack
    feats1 = jax.random.normal(k_x, (8, 4, num_timesteps_input), jnp.float32)
    check(feats1, fc_weight)

    # 2) rows NOT a multiple of the 16-row pack (exercises the pad path)
    feats2 = jax.random.normal(k_x2, (5, 3, num_timesteps_input), jnp.float32)
    check(feats2, fc_weight)

    # 3) larger input: grid > 1 with a masked partial boundary block
    feats3 = jax.random.normal(k_x3, (4100, 4, num_timesteps_input), jnp.float32)
    check(feats3, fc_weight)

    # 4) fallback path (T does not divide 128)
    T2 = 12
    w2 = jax.random.uniform(
        jax.random.fold_in(k_w, 1), (hidden_units, T2),
        minval=-1.0 / (T2 ** 0.5), maxval=1.0 / (T2 ** 0.5), dtype=jnp.float32,
    )
    feats4 = jax.random.normal(jax.random.fold_in(k_x, 2), (8, 4, T2), jnp.float32)
    check(feats4, w2)

    print("KERNEL_OK")
</pallas_src>

<mosaic_0001>
module attributes {stable_mosaic.version = 11 : i64} {
  func.func @_row_tile_matmul_kernel(%arg0: i32, %arg1: memref<128x512xf32, #tpu.memory_space<vmem>>, %arg2: memref<2x128xf32, #tpu.memory_space<vmem>>, %arg3: memref<2x512xf32, #tpu.memory_space<vmem>>) attributes {dimension_semantics = [#tpu.dimension_semantics<parallel>], iteration_bounds = array<i64: 1>, scalar_prefetch = 0 : i64, scratch_operands = 0 : i64, tpu.core_type = #tpu.core_type<tc>, window_params = [{pipeline_mode = #tpu.pipeline_mode<synchronous>, transform_indices = @transform_0, window_bounds = array<i64: 128, 512>}, {transform_indices = @transform_1, window_bounds = array<i64: 2, 128>}, {transform_indices = @transform_2, window_bounds = array<i64: 2, 512>}]} {
    %c0 = arith.constant 0 : index
    %c0_0 = arith.constant 0 : index
    %0 = vector.load %arg2[%c0, %c0_0] : memref<2x128xf32, #tpu.memory_space<vmem>>, vector<2x128xf32>
    %c0_1 = arith.constant 0 : index
    %c0_2 = arith.constant 0 : index
    %1 = vector.load %arg1[%c0_1, %c0_2] : memref<128x512xf32, #tpu.memory_space<vmem>>, vector<128x512xf32>
    %cst = arith.constant dense<0.000000e+00> : vector<2x512xf32>
    %2 = tpu.matmul %0, %1, %cst {dimension_numbers = #tpu.dot_dimension_numbers<[1], [0], [0], [1], [0, 0, 1, 1], [], []>} : vector<2x128xf32>, vector<128x512xf32>, vector<2x512xf32> -> vector<2x512xf32>
    %c0_3 = arith.constant 0 : index
    %c0_4 = arith.constant 0 : index
    %3 = vector.load %arg3[%c0_3, %c0_4] : memref<2x512xf32, #tpu.memory_space<vmem>>, vector<2x512xf32>
    tpu.vector_store %arg3[%c0_3, %c0_4], %2 {strides = array<i32>} : memref<2x512xf32, #tpu.memory_space<vmem>>, vector<2x512xf32>,
    return
  }
  func.func @transform_0(%arg0: i32) -> (i32, i32) {
    %c0_i32 = arith.constant 0 : i32
    %c0_i32_0 = arith.constant 0 : i32
    %c0_i32_1 = arith.constant 0 : i32
    return %c0_i32, %c0_i32_0 : i32, i32
  }
  func.func @transform_1(%arg0: i32) -> (i32, i32) {
    %c0_i32 = arith.constant 0 : i32
    %c0_i32_0 = arith.constant 0 : i32
    return %arg0, %c0_i32 : i32, i32
  }
  func.func @transform_2(%arg0: i32) -> (i32, i32) {
    %c0_i32 = arith.constant 0 : i32
    %c0_i32_0 = arith.constant 0 : i32
    return %arg0, %c0_i32 : i32, i32
  }
}

</mosaic_0001>

<llo_original>
// kernel: tpu_custom_call.1
$region0: #{tpu_custom_call.1}
  #allocation0 [shape = 'u32[]', space=smem, size = 0x4, offset = 0x4, fixed_abs, tag = 'smem constant byte address 0x4 - core index']
  #allocation1 [shape = 'u32[72,128]{1,0:T(1,128)}', space=vmem, size = 0x9000, scoped, tag = 'internal scratch']
  %s0 = inlined_call_operand.hbm [shape: f32[128,512], index: 0, kind: input, shape index: {}]
  %s1 = inlined_call_operand.hbm [shape: f32[2,128], index: 1, kind: input, shape index: {}]
  %s2 = inlined_call_operand.hbm [shape: f32[2,512], index: 2, kind: output, shape index: {}]
  %s3 = sld [smem:[#allocation0]]
  $region26: #{tpu_custom_call.1} parent=0
    _
  %s5 = ssub.s32 1, %s3
  %s6 = scalar_select 0, %s5, %s3
  $region1: #{tpu_custom_call.1} parent=0
    #allocation2 [shape = 'u8[262144]{0}', space=vmem, size = 0x40000, scoped, tag = 'input window, operand 0, single buffered']
    #allocation3 [shape = 's32[1]{0}', space=sflag, size = 0x4, scoped, tag = 'scoped memory for tpu_custom_call.1']
    #allocation4 [shape = 's32[1]{0}', space=sflag, size = 0x4, scoped, tag = 'scoped memory for tpu_custom_call.1']
    #allocation5 [shape = 'u8[1024]{0}', space=vmem, size = 0x400, scoped, tag = 'input window, operand 1, single buffered']
    #allocation6 [shape = 's32[1]{0}', space=sflag, size = 0x4, scoped, tag = 'scoped memory for tpu_custom_call.1']
    #allocation7 [shape = 'u8[4096]{0}', space=vmem, size = 0x1000, scoped, tag = 'output window, operand 0, single buffered']
    %7 = vsyncpa [#allocation3], 0
    %8 = vsyncpa [#allocation6], 0
    %9 = vsyncpa [#allocation4], 0
    // Predicated region
    $region2: #{tpu_custom_call.1} parent=1 // pred_check
      _
    $region3: #{tpu_custom_call.1} parent=1 // pred_check_branch
      %11 = sbr.rel (0) target = $region5
    $region4: #{tpu_custom_call.1} parent=1 // pred_region
      %13 = vsyncadd [#allocation3], 0
      %s14 = sshll.u32 %s0, 4
      %s15 = int_to_ptr.hbm [resolvable:$true] %s14
      %s16 = sshll.u32 [#allocation2], 4
      %s17 = int_to_ptr.vmem [resolvable:$true] %s16
      %22 = dma.hbm_to_vmem [thread:$0]  %s15, 8192, %s17, [#allocation3], 512, 512, 32
    $region5: #{tpu_custom_call.1} parent=1 // pred_fallthru
      _
    // Predicated region
    $region6: #{tpu_custom_call.1} parent=1 // pred_check
      _
    $region7: #{tpu_custom_call.1} parent=1 // pred_check_branch
      %24 = sbr.rel (0) target = $region9
    $region8: #{tpu_custom_call.1} parent=1 // pred_region
      %26 = vsyncadd [#allocation6], 0
      %s28 = sshll.u32 %s1, 4
      %s29 = int_to_ptr.hbm [resolvable:$true] %s28
      %s30 = sshll.u32 [#allocation5], 4
      %s31 = int_to_ptr.vmem [resolvable:$true] %s30
      %33 = dma.hbm_to_vmem [thread:$0]  %s29, 32, %s31, [#allocation6]
    $region9: #{tpu_custom_call.1} parent=1 // pred_fallthru
      _
    // Predicated region
    $region10: #{tpu_custom_call.1} parent=1 // pred_check
      _
    $region11: #{tpu_custom_call.1} parent=1 // pred_check_branch
      %35 = sbr.rel (0) target = $region13
    $region12: #{tpu_custom_call.1} parent=1 // pred_region
      %37 = dma.done [#allocation3], 8192
    $region13: #{tpu_custom_call.1} parent=1 // pred_fallthru
      _
    // Predicated region
    $region14: #{tpu_custom_call.1} parent=1 // pred_check
      _
    $region15: #{tpu_custom_call.1} parent=1 // pred_check_branch
      %39 = sbr.rel (0) target = $region17
    $region16: #{tpu_custom_call.1} parent=1 // pred_region
      %41 = dma.done [#allocation6], 32
    $region17: #{tpu_custom_call.1} parent=1 // pred_fallthru
      _
    %v42 = vld [vmem:[#allocation5] sm:$0x3]
    %v43 = vld [vmem:[#allocation2] sm:$0xff]
    %v44 = vld [vmem:[#allocation2 + $0x8] sm:$0xff]
    %v45 = vld [vmem:[#allocation2 + $0x10] sm:$0xff]
    %v46 = vld [vmem:[#allocation2 + $0x18] sm:$0xff]
    %v47 = vld [vmem:[#allocation2 + $0x20] sm:$0xff]
    %v48 = vld [vmem:[#allocation2 + $0x28] sm:$0xff]
    %v49 = vld [vmem:[#allocation2 + $0x30] sm:$0xff]
    %v50 = vld [vmem:[#allocation2 + $0x38] sm:$0xff]
    %v51 = vld [vmem:[#allocation2 + $0x40] sm:$0xff]
    %v52 = vld [vmem:[#allocation2 + $0x48] sm:$0xff]
    %v53 = vld [vmem:[#allocation2 + $0x50] sm:$0xff]
    %v54 = vld [vmem:[#allocation2 + $0x58] sm:$0xff]
    %v55 = vld [vmem:[#allocation2 + $0x60] sm:$0xff]
    %v56 = vld [vmem:[#allocation2 + $0x68] sm:$0xff]
    %v57 = vld [vmem:[#allocation2 + $0x70] sm:$0xff]
    %v58 = vld [vmem:[#allocation2 + $0x78] sm:$0xff]
    %v59 = vld [vmem:[#allocation2 + $0x80] sm:$0xff]
    %v60 = vld [vmem:[#allocation2 + $0x88] sm:$0xff]
    %v61 = vld [vmem:[#allocation2 + $0x90] sm:$0xff]
    %v62 = vld [vmem:[#allocation2 + $0x98] sm:$0xff]
    %v63 = vld [vmem:[#allocation2 + $0xa0] sm:$0xff]
    %v64 = vld [vmem:[#allocation2 + $0xa8] sm:$0xff]
    %v65 = vld [vmem:[#allocation2 + $0xb0] sm:$0xff]
    %v66 = vld [vmem:[#allocation2 + $0xb8] sm:$0xff]
    %v67 = vld [vmem:[#allocation2 + $0xc0] sm:$0xff]
    %v68 = vld [vmem:[#allocation2 + $0xc8] sm:$0xff]
    %v69 = vld [vmem:[#allocation2 + $0xd0] sm:$0xff]
    %v70 = vld [vmem:[#allocation2 + $0xd8] sm:$0xff]
    %v71 = vld [vmem:[#allocation2 + $0xe0] sm:$0xff]
    %v72 = vld [vmem:[#allocation2 + $0xe8] sm:$0xff]
    %v73 = vld [vmem:[#allocation2 + $0xf0] sm:$0xff]
    %v74 = vld [vmem:[#allocation2 + $0xf8] sm:$0xff]
    %v75 = vld [vmem:[#allocation2 + $0x100] sm:$0xff]
    %v76 = vld [vmem:[#allocation2 + $0x108] sm:$0xff]
    %v77 = vld [vmem:[#allocation2 + $0x110] sm:$0xff]
    %v78 = vld [vmem:[#allocation2 + $0x118] sm:$0xff]
    %v79 = vld [vmem:[#allocation2 + $0x120] sm:$0xff]
    %v80 = vld [vmem:[#allocation2 + $0x128] sm:$0xff]
    %v81 = vld [vmem:[#allocation2 + $0x130] sm:$0xff]
    %v82 = vld [vmem:[#allocation2 + $0x138] sm:$0xff]
    %v83 = vld [vmem:[#allocation2 + $0x140] sm:$0xff]
    %v84 = vld [vmem:[#allocation2 + $0x148] sm:$0xff]
    %v85 = vld [vmem:[#allocation2 + $0x150] sm:$0xff]
    %v86 = vld [vmem:[#allocation2 + $0x158] sm:$0xff]
    %v87 = vld [vmem:[#allocation2 + $0x160] sm:$0xff]
    %v88 = vld [vmem:[#allocation2 + $0x168] sm:$0xff]
    %v89 = vld [vmem:[#allocation2 + $0x170] sm:$0xff]
    %v90 = vld [vmem:[#allocation2 + $0x178] sm:$0xff]
    %v91 = vld [vmem:[#allocation2 + $0x180] sm:$0xff]
    %v92 = vld [vmem:[#allocation2 + $0x188] sm:$0xff]
    %v93 = vld [vmem:[#allocation2 + $0x190] sm:$0xff]
    %v94 = vld [vmem:[#allocation2 + $0x198] sm:$0xff]
    %v95 = vld [vmem:[#allocation2 + $0x1a0] sm:$0xff]
    %v96 = vld [vmem:[#allocation2 + $0x1a8] sm:$0xff]
    %v97 = vld [vmem:[#allocation2 + $0x1b0] sm:$0xff]
    %v98 = vld [vmem:[#allocation2 + $0x1b8] sm:$0xff]
    %v99 = vld [vmem:[#allocation2 + $0x1c0] sm:$0xff]
    %v100 = vld [vmem:[#allocation2 + $0x1c8] sm:$0xff]
    %v101 = vld [vmem:[#allocation2 + $0x1d0] sm:$0xff]
    %v102 = vld [vmem:[#allocation2 + $0x1d8] sm:$0xff]
    %v103 = vld [vmem:[#allocation2 + $0x1e0] sm:$0xff]
    %v104 = vld [vmem:[#allocation2 + $0x1e8] sm:$0xff]
    %v105 = vld [vmem:[#allocation2 + $0x1f0] sm:$0xff]
    %v106 = vld [vmem:[#allocation2 + $0x1f8] sm:$0xff]
    %107 = vmatpush.msra.mxu0 %v103
    %108 = vmatpush.msra.mxu0 %v99
    %109 = vmatpush.msra.mxu0 %v95
    %110 = vmatpush.msra.mxu0 %v91
    %111 = vmatpush.msra.mxu0 %v87
    %112 = vmatpush.msra.mxu0 %v83
    %113 = vmatpush.msra.mxu0 %v79
    %114 = vmatpush.msra.mxu0 %v75
    %115 = vmatpush.msra.mxu0 %v71
    %116 = vmatpush.msra.mxu0 %v67
    %117 = vmatpush.msra.mxu0 %v63
    %118 = vmatpush.msra.mxu0 %v59
    %119 = vmatpush.msra.mxu0 %v55
    %120 = vmatpush.msra.mxu0 %v51
    %121 = vmatpush.msra.mxu0 %v47
    %122 = vmatpush.msra.mxu0 %v43
    %123 = vmatmul.f32.gmra.mxu0 %v42
    %v124 = vpop.f32.mrf.mxu0
    %v125 = vadd.f32 0.0, %v124
    %126 = vdwg.mxu0
    %127 = vmatpush.msra.mxu0 %v104
    %128 = vmatpush.msra.mxu0 %v100
    %129 = vmatpush.msra.mxu0 %v96
    %130 = vmatpush.msra.mxu0 %v92
    %131 = vmatpush.msra.mxu0 %v88
    %132 = vmatpush.msra.mxu0 %v84
    %133 = vmatpush.msra.mxu0 %v80
    %134 = vmatpush.msra.mxu0 %v76
    %135 = vmatpush.msra.mxu0 %v72
    %136 = vmatpush.msra.mxu0 %v68
    %137 = vmatpush.msra.mxu0 %v64
    %138 = vmatpush.msra.mxu0 %v60
    %139 = vmatpush.msra.mxu0 %v56
    %140 = vmatpush.msra.mxu0 %v52
    %141 = vmatpush.msra.mxu0 %v48
    %142 = vmatpush.msra.mxu0 %v44
    %143 = vmatmul.f32.gmra.mxu0 %v42
    %v144 = vpop.f32.mrf.mxu0
    %v145 = vadd.f32 0.0, %v144
    %146 = vdwg.mxu0
    %147 = vmatpush.msra.mxu0 %v105
    %148 = vmatpush.msra.mxu0 %v101
    %149 = vmatpush.msra.mxu0 %v97
    %150 = vmatpush.msra.mxu0 %v93
    %151 = vmatpush.msra.mxu0 %v89
    %152 = vmatpush.msra.mxu0 %v85
    %153 = vmatpush.msra.mxu0 %v81
    %154 = vmatpush.msra.mxu0 %v77
    %155 = vmatpush.msra.mxu0 %v73
    %156 = vmatpush.msra.mxu0 %v69
    %157 = vmatpush.msra.mxu0 %v65
    %158 = vmatpush.msra.mxu0 %v61
    %159 = vmatpush.msra.mxu0 %v57
    %160 = vmatpush.msra.mxu0 %v53
    %161 = vmatpush.msra.mxu0 %v49
    %162 = vmatpush.msra.mxu0 %v45
    %163 = vmatmul.f32.gmra.mxu0 %v42
    %v164 = vpop.f32.mrf.mxu0
    %v165 = vadd.f32 0.0, %v164
    %166 = vdwg.mxu0
    %167 = vmatpush.msra.mxu0 %v106
    %168 = vmatpush.msra.mxu0 %v102
    %169 = vmatpush.msra.mxu0 %v98
    %170 = vmatpush.msra.mxu0 %v94
    %171 = vmatpush.msra.mxu0 %v90
    %172 = vmatpush.msra.mxu0 %v86
    %173 = vmatpush.msra.mxu0 %v82
    %174 = vmatpush.msra.mxu0 %v78
    %175 = vmatpush.msra.mxu0 %v74
    %176 = vmatpush.msra.mxu0 %v70
    %177 = vmatpush.msra.mxu0 %v66
    %178 = vmatpush.msra.mxu0 %v62
    %179 = vmatpush.msra.mxu0 %v58
    %180 = vmatpush.msra.mxu0 %v54
    %181 = vmatpush.msra.mxu0 %v50
    %182 = vmatpush.msra.mxu0 %v46
    %183 = vmatmul.f32.gmra.mxu0 %v42
    %v184 = vpop.f32.mrf.mxu0
    %v185 = vadd.f32 0.0, %v184
    %186 = vdwg.mxu0
    %v191 = vrot.slane %v145, 6
    %v192 = vrot.slane %v165, 4
    %v193 = vrot.slane %v185, 2
    %vm194 = vcmask 1041408
    %v195 = vsel %vm194, %v125, %v191
    %vm196 = vcmask 1045508
    %v197 = vsel %vm196, %v192, %v193
    %vm198 = vcmask 1043456
    %v199 = vsel %vm198, %v195, %v197
    %201 = vst [vmem:[#allocation7] sm:$0xff] %v199
    // Predicated region
    $region18: #{tpu_custom_call.1} parent=1 // pred_check
      _
    $region19: #{tpu_custom_call.1} parent=1 // pred_check_branch
      %203 = sbr.rel (0) target = $region21
    $region20: #{tpu_custom_call.1} parent=1 // pred_region
      %205 = vsyncadd [#allocation4], 0
      %s207 = sshll.u32 [#allocation7], 4
      %s208 = int_to_ptr.vmem [resolvable:$true] %s207
      %s209 = sshll.u32 %s2, 4
      %s210 = int_to_ptr.hbm [resolvable:$true] %s209
      %212 = dma.vmem_to_hbm [thread:$0]  %s208, 128, %s210, [#allocation4]
    $region21: #{tpu_custom_call.1} parent=1 // pred_fallthru
      _
    // Predicated region
    $region22: #{tpu_custom_call.1} parent=1 // pred_check
      _
    $region23: #{tpu_custom_call.1} parent=1 // pred_check_branch
      %214 = sbr.rel (0) target = $region25
    $region24: #{tpu_custom_call.1} parent=1 // pred_region
      %216 = dma.done [#allocation4], 128
    $region25: #{tpu_custom_call.1} parent=1 // pred_fallthru
      _
    %217 = vsyncpa [#allocation3], 1
    %218 = vsyncpa [#allocation6], 1
    %219 = vsyncpa [#allocation4], 1

</llo_original>
